<compile_context>
chip_gen: v7x
topology: tpu7x:2x2x1
jax: 0.10.0
libtpu: 0.0.40
codegen_flags: <defaults>
</compile_context>

<pallas_src>
import functools

import jax
import jax.numpy as jnp
from jax.experimental import pallas as pl
from jax.experimental.pallas import tpu as pltpu

LANE = 128                       # pad all feature dims to the native lane width
G_PAD = 8                        # pad #graphs to a full sublane group
VMEM = pltpu.MemorySpace.VMEM


def _pad2d(a, rows, cols):
    r, c = a.shape
    return jnp.pad(a, ((0, rows - r), (0, cols - c)))


# ----------------------------------------------------------------- kernel ---

def gin_fused_kernel(adj_ref, x_ref, pool_ref, conv_w_ref, conv_b_ref,
                     mlp_w_ref, mlp_b_ref, o_ref, *, num_layers, num_classes):
    bf16 = jnp.bfloat16
    a = adj_ref[...]                       # [N, N] bf16, diag holds (1 + eps)
    x = x_ref[...]                         # [N, LANE] bf16

    # --- GINConv stack (statically unrolled; weights stacked per layer) ---
    for l in range(num_layers):
        # aggregation: (1+eps)*x_i + sum_{j in N(i)} x_j == A' @ x  (diag folded)
        agg = jnp.dot(a, x, preferred_element_type=jnp.float32)        # f32
        # MLP: Linear -> ReLU -> BatchNorm1d(eval)  [BN folded into W2/b2]
        h = jnp.dot(agg.astype(bf16), conv_w_ref[l, 0],
                    preferred_element_type=jnp.float32) + conv_b_ref[l, 0]
        h = jnp.maximum(h, 0.0)
        # final Linear of the per-conv MLP (BN pre-folded, no ReLU)
        x = (jnp.dot(h.astype(bf16), conv_w_ref[l, 1],
                     preferred_element_type=jnp.float32)
             + conv_b_ref[l, 1]).astype(bf16)
        # TODO(synk): nn.Dropout is identity in eval mode; training-mode RNG
        # dropout (pltpu.prng_*) not implemented.

    # --- global_add_pool via one-hot pooling matrix ---
    g = jnp.dot(pool_ref[...], x, preferred_element_type=jnp.float32)  # [Gp,128]

    # --- readout MLP: Linear -> ReLU, then Linear (no BatchNorm) ---
    h = jnp.dot(g.astype(bf16), mlp_w_ref[0],
                preferred_element_type=jnp.float32) + mlp_b_ref[0]
    h = jnp.maximum(h, 0.0)
    logits = jnp.dot(h.astype(bf16), mlp_w_ref[1],
                     preferred_element_type=jnp.float32) + mlp_b_ref[1]

    # --- log_softmax over the first num_classes (valid) lanes ---
    lane_idx = jax.lax.broadcasted_iota(jnp.int32, logits.shape, 1)
    valid = lane_idx < num_classes
    z = jnp.where(valid, logits, -1e30)
    m = jnp.max(z, axis=1, keepdims=True)
    s = z - m
    e = jnp.where(valid, jnp.exp(s), 0.0)
    lse = jnp.log(jnp.sum(e, axis=1, keepdims=True))
    # lane/sublane-dense store of the full padded block; host slices valid part
    o_ref[...] = s - lse


# ---------------------------------------------------------------- wrapper ---

def gin_forward(params, x_bf16, adj_bf16, pool_bf16, *, num_graphs, num_classes):
    num_layers = params["conv_w"].shape[0]
    g_pad = pool_bf16.shape[0]
    kernel = functools.partial(gin_fused_kernel, num_layers=num_layers,
                               num_classes=num_classes)
    out_pad = pl.pallas_call(
        kernel,
        out_shape=jax.ShapeDtypeStruct((g_pad, LANE), jnp.float32),
        in_specs=[pl.BlockSpec(memory_space=VMEM)] * 7,
        out_specs=pl.BlockSpec(memory_space=VMEM),
    )(adj_bf16, x_bf16, pool_bf16,
      params["conv_w"], params["conv_b"], params["mlp_w"], params["mlp_b"])
    return out_pad[:num_graphs, :num_classes]


# ------------------------------------------------------------ param setup ---

def init_linear(key, in_dim, out_dim):
    # PyTorch nn.Linear default init: U(-1/sqrt(fan_in), 1/sqrt(fan_in)).
    # Weight stored as [in, out] so the kernel computes x @ W.
    k1, k2 = jax.random.split(key)
    bound = 1.0 / float(in_dim) ** 0.5
    w = jax.random.uniform(k1, (in_dim, out_dim), jnp.float32, -bound, bound)
    b = jax.random.uniform(k2, (out_dim,), jnp.float32, -bound, bound)
    return w, b


def fold_bn_into_linear(w2, b2, dim, bn_eps=1e-5):
    # Fresh BatchNorm1d (eval): gamma=1, beta=0, running_mean=0, running_var=1.
    # BN applies to the INPUT of Linear2:
    #   (h*scale + shift) @ W2 + b2 == h @ (scale[:,None]*W2) + (shift@W2 + b2)
    gamma = jnp.ones((dim,), jnp.float32)
    beta = jnp.zeros((dim,), jnp.float32)
    rm = jnp.zeros((dim,), jnp.float32)
    rv = jnp.ones((dim,), jnp.float32)
    scale = gamma / jnp.sqrt(rv + bn_eps)
    shift = beta - rm * scale
    return scale[:, None] * w2, shift @ w2 + b2


def init_gin_params(key, gnn_layers, num_features, hidden_dim, num_classes):
    # hidden_layers = 2 -> each GINConv MLP:
    #   [Linear(in, hidden), ReLU, BatchNorm1d(hidden)] then [Linear(hidden, hidden)]
    # Readout MLP (batch_norm=False): [Linear(hidden, hidden), ReLU] then
    #   [Linear(hidden, num_classes)].
    # Weights zero-padded to 128 lanes (semantics preserving), BN folded into
    # W2/b2, stacked, and cast to bf16 (biases stay f32 for f32 epilogues).
    assert max(num_features, hidden_dim, num_classes) <= LANE
    keys = jax.random.split(key, 2 * gnn_layers + 2)
    conv_w, conv_b = [], []
    in_dim = num_features
    for layer in range(gnn_layers):
        w1, b1 = init_linear(keys[2 * layer], in_dim, hidden_dim)
        w2, b2 = init_linear(keys[2 * layer + 1], hidden_dim, hidden_dim)
        w2f, b2f = fold_bn_into_linear(w2, b2, hidden_dim)
        conv_w.append(jnp.stack([_pad2d(w1, LANE, LANE), _pad2d(w2f, LANE, LANE)]))
        conv_b.append(jnp.stack([_pad2d(b1[None, :], 1, LANE),
                                 _pad2d(b2f[None, :], 1, LANE)]))
        in_dim = hidden_dim
    mw1, mb1 = init_linear(keys[-2], hidden_dim, hidden_dim)
    mw2, mb2 = init_linear(keys[-1], hidden_dim, num_classes)
    return dict(
        conv_w=jnp.stack(conv_w).astype(jnp.bfloat16),   # [L, 2, 128, 128]
        conv_b=jnp.stack(conv_b),                        # [L, 2, 1, 128] f32
        mlp_w=jnp.stack([_pad2d(mw1, LANE, LANE),
                         _pad2d(mw2, LANE, LANE)]).astype(jnp.bfloat16),
        mlp_b=jnp.stack([_pad2d(mb1[None, :], 1, LANE),
                         _pad2d(mb2[None, :], 1, LANE)]),
    )


# --------------------------------------------------------- pure-JAX check ---

def reference_forward(params, x_bf16, adj_bf16, pool_bf16, num_graphs, num_classes):
    # f32-math reference consuming the SAME bf16-quantized inputs and applying
    # the same activation->bf16 casts as the kernel, so parity can be tight.
    f32, bf16 = jnp.float32, jnp.bfloat16
    a = adj_bf16.astype(f32)
    x = x_bf16.astype(f32)
    cw = params["conv_w"].astype(f32)
    cb = params["conv_b"]
    for l in range(cw.shape[0]):
        agg = a @ x
        h = jnp.maximum(agg.astype(bf16).astype(f32) @ cw[l, 0] + cb[l, 0], 0.0)
        x = h.astype(bf16).astype(f32) @ cw[l, 1] + cb[l, 1]
        x = x.astype(bf16).astype(f32)
    g = pool_bf16.astype(f32) @ x
    mw = params["mlp_w"].astype(f32)
    mb = params["mlp_b"]
    h = jnp.maximum(g.astype(bf16).astype(f32) @ mw[0] + mb[0], 0.0)
    logits = (h.astype(bf16).astype(f32) @ mw[1] + mb[1])[:num_graphs, :num_classes]
    return jax.nn.log_softmax(logits, axis=1)


# ------------------------------------------------------------------- main ---

if __name__ == "__main__":
    key = jax.random.PRNGKey(0)
    k_x, k_params = jax.random.split(key)

    # Small synthetic graph batch: 2 graphs x 16 nodes = 32 nodes total.
    gnn_layers = 2
    num_features = 16
    hidden_dim = 32
    num_classes = 4
    nodes_per_graph = 16
    num_graphs = 2
    eps = 0.0                       # GINConv default eps
    N = num_graphs * nodes_per_graph

    # Node features, padded once to the 128-lane width, fed as bf16.
    x = jax.random.normal(k_x, (N, num_features), jnp.float32)
    x_bf16 = _pad2d(x, N, LANE).astype(jnp.bfloat16)

    # edge_index: directed ring within each graph, both directions.
    srcs, dsts = [], []
    for g in range(num_graphs):
        base = g * nodes_per_graph
        for i in range(nodes_per_graph):
            j = (i + 1) % nodes_per_graph
            srcs += [base + i, base + j]
            dsts += [base + j, base + i]
    src = jnp.asarray(srcs, jnp.int32)
    dst = jnp.asarray(dsts, jnp.int32)

    # Dense adjacency A[dst, src] with (1 + eps) folded onto the diagonal.
    # bf16 is exact for edge multiplicities up to 256 (plenty here).
    adj = jnp.zeros((N, N), jnp.float32).at[dst, src].add(1.0)
    adj = adj + (1.0 + eps) * jnp.eye(N, dtype=jnp.float32)
    adj_bf16 = adj.astype(jnp.bfloat16)

    # Pooling matrix from data.batch (one-hot rows), sublane-padded to 8 rows.
    batch = jnp.repeat(jnp.arange(num_graphs, dtype=jnp.int32), nodes_per_graph)
    pool_mat = (batch[None, :] == jnp.arange(num_graphs, dtype=jnp.int32)[:, None]
                ).astype(jnp.float32)
    pool_bf16 = _pad2d(pool_mat, G_PAD, N).astype(jnp.bfloat16)

    params = init_gin_params(k_params, gnn_layers, num_features, hidden_dim,
                             num_classes)

    out = gin_forward(params, x_bf16, adj_bf16, pool_bf16,
                      num_graphs=num_graphs, num_classes=num_classes)
    out = jax.block_until_ready(out)

    assert out.shape == (num_graphs, num_classes)
    assert bool(jnp.all(jnp.isfinite(out)))
    # log_softmax rows should exp-sum to ~1.
    assert bool(jnp.allclose(jnp.sum(jnp.exp(out), axis=1), 1.0, atol=1e-4))
    # Tight parity vs. an f32-math reference on the same bf16-quantized inputs.
    ref = reference_forward(params, x_bf16, adj_bf16, pool_bf16,
                            num_graphs, num_classes)
    assert bool(jnp.allclose(out, ref, atol=1e-2, rtol=1e-2))

    print("KERNEL_OK")
</pallas_src>

<mosaic_0001>
module attributes {stable_mosaic.version = 11 : i64} {
  func.func @gin_fused_kernel(%arg0: memref<32x32xbf16, #tpu.memory_space<vmem>>, %arg1: memref<32x128xbf16, #tpu.memory_space<vmem>>, %arg2: memref<8x32xbf16, #tpu.memory_space<vmem>>, %arg3: memref<2x2x128x128xbf16, #tpu.memory_space<vmem>>, %arg4: memref<2x2x1x128xf32, #tpu.memory_space<vmem>>, %arg5: memref<2x128x128xbf16, #tpu.memory_space<vmem>>, %arg6: memref<2x1x128xf32, #tpu.memory_space<vmem>>, %arg7: memref<8x128xf32, #tpu.memory_space<vmem>>) attributes {dimension_semantics = [], scalar_prefetch = 0 : i64, scratch_operands = 0 : i64, tpu.core_type = #tpu.core_type<tc>} {
    %c0 = arith.constant 0 : index
    %c0_0 = arith.constant 0 : index
    %0 = vector.load %arg0[%c0, %c0_0] : memref<32x32xbf16, #tpu.memory_space<vmem>>, vector<32x32xbf16>
    %c0_1 = arith.constant 0 : index
    %c0_2 = arith.constant 0 : index
    %1 = vector.load %arg1[%c0_1, %c0_2] : memref<32x128xbf16, #tpu.memory_space<vmem>>, vector<32x128xbf16>
    %cst = arith.constant dense<0.000000e+00> : vector<32x128xf32>
    %2 = tpu.matmul %0, %1, %cst {dimension_numbers = #tpu.dot_dimension_numbers<[1], [0], [0], [1], [0, 0, 1, 1], [], []>} : vector<32x32xbf16>, vector<32x128xbf16>, vector<32x128xf32> -> vector<32x128xf32>
    %3 = arith.truncf %2 : vector<32x128xf32> to vector<32x128xbf16>
    %c0_3 = arith.constant 0 : index
    %c0_4 = arith.constant 0 : index
    %c0_5 = arith.constant 0 : index
    %c0_6 = arith.constant 0 : index
    %4 = vector.load %arg3[%c0_3, %c0_4, %c0_5, %c0_6] : memref<2x2x128x128xbf16, #tpu.memory_space<vmem>>, vector<1x1x128x128xbf16>
    %5 = vector.shape_cast %4 : vector<1x1x128x128xbf16> to vector<128x128xbf16>
    %cst_7 = arith.constant dense<0.000000e+00> : vector<32x128xf32>
    %6 = tpu.matmul %3, %5, %cst_7 {dimension_numbers = #tpu.dot_dimension_numbers<[1], [0], [0], [1], [0, 0, 1, 1], [], []>} : vector<32x128xbf16>, vector<128x128xbf16>, vector<32x128xf32> -> vector<32x128xf32>
    %c0_8 = arith.constant 0 : index
    %c0_9 = arith.constant 0 : index
    %c0_10 = arith.constant 0 : index
    %c0_11 = arith.constant 0 : index
    %7 = vector.load %arg4[%c0_8, %c0_9, %c0_10, %c0_11] : memref<2x2x1x128xf32, #tpu.memory_space<vmem>>, vector<1x1x1x128xf32>
    %8 = vector.shape_cast %7 : vector<1x1x1x128xf32> to vector<1x128xf32>
    %9 = vector.broadcast %8 : vector<1x128xf32> to vector<32x128xf32>
    %10 = arith.addf %6, %9 : vector<32x128xf32>
    %cst_12 = arith.constant 0.000000e+00 : f32
    %11 = vector.broadcast %cst_12 : f32 to vector<32x128xf32>
    %12 = arith.maximumf %10, %11 : vector<32x128xf32>
    %13 = arith.truncf %12 : vector<32x128xf32> to vector<32x128xbf16>
    %c0_13 = arith.constant 0 : index
    %c1 = arith.constant 1 : index
    %c0_14 = arith.constant 0 : index
    %c0_15 = arith.constant 0 : index
    %14 = vector.load %arg3[%c0_13, %c1, %c0_14, %c0_15] : memref<2x2x128x128xbf16, #tpu.memory_space<vmem>>, vector<1x1x128x128xbf16>
    %15 = vector.shape_cast %14 : vector<1x1x128x128xbf16> to vector<128x128xbf16>
    %cst_16 = arith.constant dense<0.000000e+00> : vector<32x128xf32>
    %16 = tpu.matmul %13, %15, %cst_16 {dimension_numbers = #tpu.dot_dimension_numbers<[1], [0], [0], [1], [0, 0, 1, 1], [], []>} : vector<32x128xbf16>, vector<128x128xbf16>, vector<32x128xf32> -> vector<32x128xf32>
    %c0_17 = arith.constant 0 : index
    %c1_18 = arith.constant 1 : index
    %c0_19 = arith.constant 0 : index
    %c0_20 = arith.constant 0 : index
    %17 = vector.load %arg4[%c0_17, %c1_18, %c0_19, %c0_20] : memref<2x2x1x128xf32, #tpu.memory_space<vmem>>, vector<1x1x1x128xf32>
    %18 = vector.shape_cast %17 : vector<1x1x1x128xf32> to vector<1x128xf32>
    %19 = vector.broadcast %18 : vector<1x128xf32> to vector<32x128xf32>
    %20 = arith.addf %16, %19 : vector<32x128xf32>
    %21 = arith.truncf %20 : vector<32x128xf32> to vector<32x128xbf16>
    %cst_21 = arith.constant dense<0.000000e+00> : vector<32x128xf32>
    %22 = tpu.matmul %0, %21, %cst_21 {dimension_numbers = #tpu.dot_dimension_numbers<[1], [0], [0], [1], [0, 0, 1, 1], [], []>} : vector<32x32xbf16>, vector<32x128xbf16>, vector<32x128xf32> -> vector<32x128xf32>
    %23 = arith.truncf %22 : vector<32x128xf32> to vector<32x128xbf16>
    %c1_22 = arith.constant 1 : index
    %c0_23 = arith.constant 0 : index
    %c0_24 = arith.constant 0 : index
    %c0_25 = arith.constant 0 : index
    %24 = vector.load %arg3[%c1_22, %c0_23, %c0_24, %c0_25] : memref<2x2x128x128xbf16, #tpu.memory_space<vmem>>, vector<1x1x128x128xbf16>
    %25 = vector.shape_cast %24 : vector<1x1x128x128xbf16> to vector<128x128xbf16>
    %cst_26 = arith.constant dense<0.000000e+00> : vector<32x128xf32>
    %26 = tpu.matmul %23, %25, %cst_26 {dimension_numbers = #tpu.dot_dimension_numbers<[1], [0], [0], [1], [0, 0, 1, 1], [], []>} : vector<32x128xbf16>, vector<128x128xbf16>, vector<32x128xf32> -> vector<32x128xf32>
    %c1_27 = arith.constant 1 : index
    %c0_28 = arith.constant 0 : index
    %c0_29 = arith.constant 0 : index
    %c0_30 = arith.constant 0 : index
    %27 = vector.load %arg4[%c1_27, %c0_28, %c0_29, %c0_30] : memref<2x2x1x128xf32, #tpu.memory_space<vmem>>, vector<1x1x1x128xf32>
    %28 = vector.shape_cast %27 : vector<1x1x1x128xf32> to vector<1x128xf32>
    %29 = vector.broadcast %28 : vector<1x128xf32> to vector<32x128xf32>
    %30 = arith.addf %26, %29 : vector<32x128xf32>
    %cst_31 = arith.constant 0.000000e+00 : f32
    %31 = vector.broadcast %cst_31 : f32 to vector<32x128xf32>
    %32 = arith.maximumf %30, %31 : vector<32x128xf32>
    %33 = arith.truncf %32 : vector<32x128xf32> to vector<32x128xbf16>
    %c1_32 = arith.constant 1 : index
    %c1_33 = arith.constant 1 : index
    %c0_34 = arith.constant 0 : index
    %c0_35 = arith.constant 0 : index
    %34 = vector.load %arg3[%c1_32, %c1_33, %c0_34, %c0_35] : memref<2x2x128x128xbf16, #tpu.memory_space<vmem>>, vector<1x1x128x128xbf16>
    %35 = vector.shape_cast %34 : vector<1x1x128x128xbf16> to vector<128x128xbf16>
    %cst_36 = arith.constant dense<0.000000e+00> : vector<32x128xf32>
    %36 = tpu.matmul %33, %35, %cst_36 {dimension_numbers = #tpu.dot_dimension_numbers<[1], [0], [0], [1], [0, 0, 1, 1], [], []>} : vector<32x128xbf16>, vector<128x128xbf16>, vector<32x128xf32> -> vector<32x128xf32>
    %c1_37 = arith.constant 1 : index
    %c1_38 = arith.constant 1 : index
    %c0_39 = arith.constant 0 : index
    %c0_40 = arith.constant 0 : index
    %37 = vector.load %arg4[%c1_37, %c1_38, %c0_39, %c0_40] : memref<2x2x1x128xf32, #tpu.memory_space<vmem>>, vector<1x1x1x128xf32>
    %38 = vector.shape_cast %37 : vector<1x1x1x128xf32> to vector<1x128xf32>
    %39 = vector.broadcast %38 : vector<1x128xf32> to vector<32x128xf32>
    %40 = arith.addf %36, %39 : vector<32x128xf32>
    %41 = arith.truncf %40 : vector<32x128xf32> to vector<32x128xbf16>
    %c0_41 = arith.constant 0 : index
    %c0_42 = arith.constant 0 : index
    %42 = vector.load %arg2[%c0_41, %c0_42] : memref<8x32xbf16, #tpu.memory_space<vmem>>, vector<8x32xbf16>
    %cst_43 = arith.constant dense<0.000000e+00> : vector<8x128xf32>
    %43 = tpu.matmul %42, %41, %cst_43 {dimension_numbers = #tpu.dot_dimension_numbers<[1], [0], [0], [1], [0, 0, 1, 1], [], []>} : vector<8x32xbf16>, vector<32x128xbf16>, vector<8x128xf32> -> vector<8x128xf32>
    %44 = arith.truncf %43 : vector<8x128xf32> to vector<8x128xbf16>
    %c0_44 = arith.constant 0 : index
    %c0_45 = arith.constant 0 : index
    %c0_46 = arith.constant 0 : index
    %45 = vector.load %arg5[%c0_44, %c0_45, %c0_46] : memref<2x128x128xbf16, #tpu.memory_space<vmem>>, vector<1x128x128xbf16>
    %46 = vector.shape_cast %45 : vector<1x128x128xbf16> to vector<128x128xbf16>
    %cst_47 = arith.constant dense<0.000000e+00> : vector<8x128xf32>
    %47 = tpu.matmul %44, %46, %cst_47 {dimension_numbers = #tpu.dot_dimension_numbers<[1], [0], [0], [1], [0, 0, 1, 1], [], []>} : vector<8x128xbf16>, vector<128x128xbf16>, vector<8x128xf32> -> vector<8x128xf32>
    %c0_48 = arith.constant 0 : index
    %c0_49 = arith.constant 0 : index
    %c0_50 = arith.constant 0 : index
    %48 = vector.load %arg6[%c0_48, %c0_49, %c0_50] : memref<2x1x128xf32, #tpu.memory_space<vmem>>, vector<1x1x128xf32>
    %49 = vector.shape_cast %48 : vector<1x1x128xf32> to vector<1x128xf32>
    %50 = vector.broadcast %49 : vector<1x128xf32> to vector<8x128xf32>
    %51 = arith.addf %47, %50 : vector<8x128xf32>
    %cst_51 = arith.constant 0.000000e+00 : f32
    %52 = vector.broadcast %cst_51 : f32 to vector<8x128xf32>
    %53 = arith.maximumf %51, %52 : vector<8x128xf32>
    %54 = arith.truncf %53 : vector<8x128xf32> to vector<8x128xbf16>
    %c1_52 = arith.constant 1 : index
    %c0_53 = arith.constant 0 : index
    %c0_54 = arith.constant 0 : index
    %55 = vector.load %arg5[%c1_52, %c0_53, %c0_54] : memref<2x128x128xbf16, #tpu.memory_space<vmem>>, vector<1x128x128xbf16>
    %56 = vector.shape_cast %55 : vector<1x128x128xbf16> to vector<128x128xbf16>
    %cst_55 = arith.constant dense<0.000000e+00> : vector<8x128xf32>
    %57 = tpu.matmul %54, %56, %cst_55 {dimension_numbers = #tpu.dot_dimension_numbers<[1], [0], [0], [1], [0, 0, 1, 1], [], []>} : vector<8x128xbf16>, vector<128x128xbf16>, vector<8x128xf32> -> vector<8x128xf32>
    %c1_56 = arith.constant 1 : index
    %c0_57 = arith.constant 0 : index
    %c0_58 = arith.constant 0 : index
    %58 = vector.load %arg6[%c1_56, %c0_57, %c0_58] : memref<2x1x128xf32, #tpu.memory_space<vmem>>, vector<1x1x128xf32>
    %59 = vector.shape_cast %58 : vector<1x1x128xf32> to vector<1x128xf32>
    %60 = vector.broadcast %59 : vector<1x128xf32> to vector<8x128xf32>
    %61 = arith.addf %57, %60 : vector<8x128xf32>
    %62 = tpu.iota {dimensions = array<i32: 1>} : vector<8x128xi32>
    %c4_i32 = arith.constant 4 : i32
    %63 = vector.broadcast %c4_i32 : i32 to vector<8x128xi32>
    %64 = arith.cmpi slt, %62, %63 : vector<8x128xi32>
    %cst_59 = arith.constant -1.000000e+30 : f32
    %65 = vector.broadcast %cst_59 : f32 to vector<8x128xf32>
    %66 = arith.select %64, %61, %65 : vector<8x128xi1>, vector<8x128xf32>
    %cst_60 = arith.constant dense<0xFF800000> : vector<8xf32>
    %67 = vector.multi_reduction <maximumf>, %66, %cst_60 [1] : vector<8x128xf32> to vector<8xf32>
    %68 = vector.shape_cast %67 : vector<8xf32> to vector<8x1xf32>
    %69 = vector.broadcast %68 : vector<8x1xf32> to vector<8x128xf32>
    %70 = arith.subf %66, %69 : vector<8x128xf32>
    %71 = math.exp %70 : vector<8x128xf32>
    %cst_61 = arith.constant 0.000000e+00 : f32
    %72 = vector.broadcast %cst_61 : f32 to vector<8x128xf32>
    %73 = arith.select %64, %71, %72 : vector<8x128xi1>, vector<8x128xf32>
    %cst_62 = arith.constant dense<0.000000e+00> : vector<8xf32>
    %74 = vector.multi_reduction <add>, %73, %cst_62 [1] : vector<8x128xf32> to vector<8xf32>
    %75 = vector.shape_cast %74 : vector<8xf32> to vector<8x1xf32>
    %76 = math.log %75 : vector<8x1xf32>
    %77 = vector.broadcast %76 : vector<8x1xf32> to vector<8x128xf32>
    %78 = arith.subf %70, %77 : vector<8x128xf32>
    %c0_63 = arith.constant 0 : index
    %c0_64 = arith.constant 0 : index
    %79 = vector.load %arg7[%c0_63, %c0_64] : memref<8x128xf32, #tpu.memory_space<vmem>>, vector<8x128xf32>
    tpu.vector_store %arg7[%c0_63, %c0_64], %78 {strides = array<i32>} : memref<8x128xf32, #tpu.memory_space<vmem>>, vector<8x128xf32>,
    return
  }
}

</mosaic_0001>

<llo_original>
// kernel: tpu_custom_call.1
$region0: #{tpu_custom_call.1}
  #allocation0 [shape = 'u32[]', space=smem, size = 0x4, offset = 0x4, fixed_abs, tag = 'smem constant byte address 0x4 - core index']
  #allocation1 [shape = 'u32[144,128]{1,0:T(1,128)}', space=vmem, size = 0x12000, scoped, tag = 'internal scratch']
  %s0 = inlined_call_operand.hbm [shape: bf16[32,32], index: 0, kind: input, shape index: {}]
  %s1 = inlined_call_operand.hbm [shape: bf16[32,128], index: 1, kind: input, shape index: {}]
  %s2 = inlined_call_operand.vmem [shape: bf16[8,32], index: 2, kind: input, shape index: {}]
  %s3 = inlined_call_operand.hbm [shape: bf16[2,2,128,128], index: 3, kind: input, shape index: {}]
  %s4 = inlined_call_operand.vmem [shape: f32[2,2,1,128], index: 4, kind: input, shape index: {}]
  %s5 = inlined_call_operand.hbm [shape: bf16[2,128,128], index: 5, kind: input, shape index: {}]
  %s6 = inlined_call_operand.vmem [shape: f32[2,1,128], index: 6, kind: input, shape index: {}]
  %s7 = inlined_call_operand.hbm [shape: f32[8,128], index: 7, kind: output, shape index: {}]
  %s8 = sld [smem:[#allocation0]]
  $region54: #{tpu_custom_call.1} parent=0
    _
  %s10 = ssub.s32 1, %s8
  %s11 = scalar_select 0, %s10, %s8
  $region1: #{tpu_custom_call.1} parent=0
    #allocation2 [shape = 'u8[8192]{0}', space=vmem, size = 0x2000, scoped, tag = 'input window, operand 0, single buffered']
    #allocation3 [shape = 's32[1]{0}', space=sflag, size = 0x4, scoped, tag = 'scoped memory for tpu_custom_call.1']
    #allocation4 [shape = 's32[1]{0}', space=sflag, size = 0x4, scoped, tag = 'scoped memory for tpu_custom_call.1']
    #allocation5 [shape = 'u8[8192]{0}', space=vmem, size = 0x2000, scoped, tag = 'input window, operand 1, single buffered']
    #allocation6 [shape = 's32[1]{0}', space=sflag, size = 0x4, scoped, tag = 'scoped memory for tpu_custom_call.1']
    #allocation7 [shape = 'u8[131072]{0}', space=vmem, size = 0x20000, scoped, tag = 'input window, operand 3, single buffered']
    #allocation8 [shape = 'u8[65536]{0}', space=vmem, size = 0x10000, scoped, tag = 'input window, operand 5, single buffered']
    #allocation9 [shape = 's32[1]{0}', space=sflag, size = 0x4, scoped, tag = 'scoped memory for tpu_custom_call.1']
    #allocation10 [shape = 'u8[4096]{0}', space=vmem, size = 0x1000, scoped, tag = 'output window, operand 0, single buffered']
    %12 = vsyncpa [#allocation3], 0
    %13 = vsyncpa [#allocation6], 0
    %14 = vsyncpa [#allocation9], 0
    %15 = vsyncpa [#allocation4], 0
    // Predicated region
    $region2: #{tpu_custom_call.1} parent=1 // pred_check
      _
    $region3: #{tpu_custom_call.1} parent=1 // pred_check_branch
      %17 = sbr.rel (0) target = $region5
    $region4: #{tpu_custom_call.1} parent=1 // pred_region
      %s19 = ssub.s32 256, 256
      %20 = vsyncadd [#allocation3], %s19
      %s21 = sshll.u32 [#allocation2], 4
      %s22 = int_to_ptr.vmem [resolvable:$true] %s21
      %27 = dma.hbm_to_vmem [thread:$0]  %s0, 256, %s22, [#allocation3], 64, 64, 4
    $region5: #{tpu_custom_call.1} parent=1 // pred_fallthru
      _
    // Predicated region
    $region6: #{tpu_custom_call.1} parent=1 // pred_check
      _
    $region7: #{tpu_custom_call.1} parent=1 // pred_check_branch
      %29 = sbr.rel (0) target = $region9
    $region8: #{tpu_custom_call.1} parent=1 // pred_region
      %s31 = ssub.s32 256, 256
      %32 = vsyncadd [#allocation6], %s31
      %s33 = sshll.u32 [#allocation5], 4
      %s34 = int_to_ptr.vmem [resolvable:$true] %s33
      %39 = dma.hbm_to_vmem [thread:$0]  %s1, 256, %s34, [#allocation6], 64, 64, 4
    $region9: #{tpu_custom_call.1} parent=1 // pred_fallthru
      _
    // Predicated region
    $region10: #{tpu_custom_call.1} parent=1 // pred_check
      _
    $region11: #{tpu_custom_call.1} parent=1 // pred_check_branch
      %41 = sbr.rel (0) target = $region13
    $region12: #{tpu_custom_call.1} parent=1 // pred_region
      _
    $region13: #{tpu_custom_call.1} parent=1 // pred_fallthru
      _
    // Predicated region
    $region14: #{tpu_custom_call.1} parent=1 // pred_check
      _
    $region15: #{tpu_custom_call.1} parent=1 // pred_check_branch
      %43 = sbr.rel (0) target = $region17
    $region16: #{tpu_custom_call.1} parent=1 // pred_region
      %s45 = ssub.s32 4096, 4096
      %46 = vsyncadd [#allocation6], %s45
      %s47 = sshll.u32 [#allocation7], 4
      %s48 = int_to_ptr.vmem [resolvable:$true] %s47
      %53 = dma.hbm_to_vmem [thread:$0]  %s3, 4096, %s48, [#allocation6], 64, 64, 4
    $region17: #{tpu_custom_call.1} parent=1 // pred_fallthru
      _
    // Predicated region
    $region18: #{tpu_custom_call.1} parent=1 // pred_check
      _
    $region19: #{tpu_custom_call.1} parent=1 // pred_check_branch
      %55 = sbr.rel (0) target = $region21
    $region20: #{tpu_custom_call.1} parent=1 // pred_region
      _
    $region21: #{tpu_custom_call.1} parent=1 // pred_fallthru
      _
    // Predicated region
    $region22: #{tpu_custom_call.1} parent=1 // pred_check
      _
    $region23: #{tpu_custom_call.1} parent=1 // pred_check_branch
      %57 = sbr.rel (0) target = $region25
    $region24: #{tpu_custom_call.1} parent=1 // pred_region
      %s59 = ssub.s32 2048, 2048
      %60 = vsyncadd [#allocation9], %s59
      %s61 = sshll.u32 [#allocation8], 4
      %s62 = int_to_ptr.vmem [resolvable:$true] %s61
      %67 = dma.hbm_to_vmem [thread:$0]  %s5, 2048, %s62, [#allocation9], 64, 64, 4
    $region25: #{tpu_custom_call.1} parent=1 // pred_fallthru
      _
    // Predicated region
    $region26: #{tpu_custom_call.1} parent=1 // pred_check
      _
    $region27: #{tpu_custom_call.1} parent=1 // pred_check_branch
      %69 = sbr.rel (0) target = $region29
    $region28: #{tpu_custom_call.1} parent=1 // pred_region
      _
    $region29: #{tpu_custom_call.1} parent=1 // pred_fallthru
      _
    // Predicated region
    $region30: #{tpu_custom_call.1} parent=1 // pred_check
      _
    $region31: #{tpu_custom_call.1} parent=1 // pred_check_branch
      %71 = sbr.rel (0) target = $region33
    $region32: #{tpu_custom_call.1} parent=1 // pred_region
      %72 = dma.done [#allocation3], 256
    $region33: #{tpu_custom_call.1} parent=1 // pred_fallthru
      _
    // Predicated region
    $region34: #{tpu_custom_call.1} parent=1 // pred_check
      _
    $region35: #{tpu_custom_call.1} parent=1 // pred_check_branch
      %74 = sbr.rel (0) target = $region37
    $region36: #{tpu_custom_call.1} parent=1 // pred_region
      %75 = dma.done [#allocation6], 256
    $region37: #{tpu_custom_call.1} parent=1 // pred_fallthru
      _
    // Predicated region
    $region38: #{tpu_custom_call.1} parent=1 // pred_check
      _
    $region39: #{tpu_custom_call.1} parent=1 // pred_check_branch
      %77 = sbr.rel (0) target = $region41
    $region40: #{tpu_custom_call.1} parent=1 // pred_region
      %78 = dma.done [#allocation6], 4096
    $region41: #{tpu_custom_call.1} parent=1 // pred_fallthru
      _
    // Predicated region
    $region42: #{tpu_custom_call.1} parent=1 // pred_check
      _
    $region43: #{tpu_custom_call.1} parent=1 // pred_check_branch
      %80 = sbr.rel (0) target = $region45
    $region44: #{tpu_custom_call.1} parent=1 // pred_region
      %81 = dma.done [#allocation9], 2048
    $region45: #{tpu_custom_call.1} parent=1 // pred_fallthru
      _
    %v83 = vld [vmem:[#allocation2] sm:$0xf]
    %v84 = vld [vmem:[#allocation2 + $0x4] sm:$0xf]
    %v85 = vld [vmem:[#allocation2 + $0x8] sm:$0xf]
    %v86 = vld [vmem:[#allocation2 + $0xc] sm:$0xf]
    %v87 = vld [vmem:[#allocation5] sm:$0xf]
    %v88 = vld [vmem:[#allocation5 + $0x4] sm:$0xf]
    %v89 = vld [vmem:[#allocation5 + $0x8] sm:$0xf]
    %v90 = vld [vmem:[#allocation5 + $0xc] sm:$0xf]
    %v95 = vunpack.c.l.b16 %v83
    %v96 = vunpack.c.l.b16 %v84
    %v97 = vunpack.c.l.b16 %v85
    %v98 = vunpack.c.l.b16 %v86
    %v99 = vpack.c.b16 %v96, %v95
    %v100 = vpack.c.b16 %v98, %v97
    %v105 = vunpack.c.l.b16 %v87
    %v106 = vunpack.c.l.b16 %v88
    %v107 = vunpack.c.l.b16 %v89
    %v108 = vunpack.c.l.b16 %v90
    %v109 = vpack.c.b16 %v106, %v105
    %v110 = vpack.c.b16 %v108, %v107
    %vm113 = vcmask 261120
    %v115 = vsel %vm113, %v99, 0
    %v118 = vsel %vm113, %v100, 0
    %120 = vmatprep.subr.bf16.mxu0 0
    %121 = vmatpush1.bf16.msra.mxu0 %v109
    %122 = vmatprep.subr.bf16.mxu0 0
    %123 = vmatpush1.bf16.msra.mxu0 %v110
    %124 = vmatprep.subr.bf16.mxu0 0
    %125 = vmatpush1.bf16.msra.mxu0 0
    %126 = vmatprep.subr.bf16.mxu0 0
    %127 = vmatpush1.bf16.msra.mxu0 0
    %128 = vmatprep.subr.bf16.mxu0 0
    %129 = vmatpush1.bf16.msra.mxu0 0
    %130 = vmatprep.subr.bf16.mxu0 0
    %131 = vmatpush1.bf16.msra.mxu0 0
    %132 = vmatprep.subr.bf16.mxu0 0
    %133 = vmatpush1.bf16.msra.mxu0 0
    %134 = vmatprep.subr.bf16.mxu0 0
    %135 = vmatpush1.bf16.msra.mxu0 0
    %136 = vmatprep.subr.bf16.mxu0 0
    %137 = vmatpush1.bf16.msra.mxu0 0
    %138 = vmatprep.subr.bf16.mxu0 0
    %139 = vmatpush1.bf16.msra.mxu0 0
    %140 = vmatprep.subr.bf16.mxu0 0
    %141 = vmatpush1.bf16.msra.mxu0 0
    %142 = vmatprep.subr.bf16.mxu0 0
    %143 = vmatpush1.bf16.msra.mxu0 0
    %144 = vmatprep.subr.bf16.mxu0 0
    %145 = vmatpush1.bf16.msra.mxu0 0
    %146 = vmatprep.subr.bf16.mxu0 0
    %147 = vmatpush1.bf16.msra.mxu0 0
    %148 = vmatprep.subr.bf16.mxu0 0
    %149 = vmatpush1.bf16.msra.mxu0 0
    %150 = vmatprep.subr.bf16.mxu0 0
    %151 = vmatpush1.bf16.msra.mxu0 0
    %152 = vmatprep.mubr.bf16.mxu0 0
    %153 = vmatmul.mubr.bf16.gmra.mrb[0].mxu0 %v115
    %v154 = vpop.f32.mrb[0].mxu0
    %v155 = vadd.f32 0.0, %v154
    %v156 = vpop.f32.mrb[0].mxu0
    %v157 = vpop.f32.mrb[0].mxu0
    %v158 = vadd.f32 0.0, %v157
    %v159 = vpop.f32.mrb[0].mxu0
    %160 = vmatprep.mubr.bf16.mxu0 0
    %161 = vmatmul.mubr.bf16.gmra.mrb[0].mxu0 %v118
    %v162 = vpop.f32.mrb[0].mxu0
    %v163 = vadd.f32 0.0, %v162
    %v164 = vpop.f32.mrb[0].mxu0
    %v165 = vpop.f32.mrb[0].mxu0
    %v166 = vadd.f32 0.0, %v165
    %v167 = vpop.f32.mrb[0].mxu0
    %168 = vdwg.mxu0
    %v169 = vpack.c.bf16 %v158, %v155
    %v170 = vpack.c.bf16 %v166, %v163
    %v171 = vld [vmem:[#allocation7] sm:$0xf]
    %v172 = vld [vmem:[#allocation7 + $0x4] sm:$0xf]
    %v173 = vld [vmem:[#allocation7 + $0x8] sm:$0xf]
    %v174 = vld [vmem:[#allocation7 + $0xc] sm:$0xf]
    %v175 = vld [vmem:[#allocation7 + $0x10] sm:$0xf]
    %v176 = vld [vmem:[#allocation7 + $0x14] sm:$0xf]
    %v177 = vld [vmem:[#allocation7 + $0x18] sm:$0xf]
    %v178 = vld [vmem:[#allocation7 + $0x1c] sm:$0xf]
    %v179 = vld [vmem:[#allocation7 + $0x20] sm:$0xf]
    %v180 = vld [vmem:[#allocation7 + $0x24] sm:$0xf]
    %v181 = vld [vmem:[#allocation7 + $0x28] sm:$0xf]
    %v182 = vld [vmem:[#allocation7 + $0x2c] sm:$0xf]
    %v183 = vld [vmem:[#allocation7 + $0x30] sm:$0xf]
    %v184 = vld [vmem:[#allocation7 + $0x34] sm:$0xf]
    %v185 = vld [vmem:[#allocation7 + $0x38] sm:$0xf]
    %v186 = vld [vmem:[#allocation7 + $0x3c] sm:$0xf]
    %v187 = vld [vmem:[%s4] sm:$0x1]
    %v189 = vlaneseq
    %v190 = vshrl.u32 %v189, 7
    %v191 = vsub.s32 0, %v190
    %v192 = vrot.slane %v187, %v191
    %v210 = vunpack.c.l.b16 %v171
    %v211 = vunpack.c.l.b16 %v172
    %v212 = vunpack.c.l.b16 %v173
    %v213 = vunpack.c.l.b16 %v174
    %v214 = vunpack.c.l.b16 %v175
    %v215 = vunpack.c.l.b16 %v176
    %v216 = vunpack.c.l.b16 %v177
    %v217 = vunpack.c.l.b16 %v178
    %v218 = vunpack.c.l.b16 %v179
    %v219 = vunpack.c.l.b16 %v180
    %v220 = vunpack.c.l.b16 %v181
    %v221 = vunpack.c.l.b16 %v182
    %v222 = vunpack.c.l.b16 %v183
    %v223 = vunpack.c.l.b16 %v184
    %v224 = vunpack.c.l.b16 %v185
    %v225 = vunpack.c.l.b16 %v186
    %v226 = vpack.c.b16 %v211, %v210
    %v227 = vpack.c.b16 %v213, %v212
    %v228 = vpack.c.b16 %v215, %v214
    %v229 = vpack.c.b16 %v217, %v216
    %v230 = vpack.c.b16 %v219, %v218
    %v231 = vpack.c.b16 %v221, %v220
    %v232 = vpack.c.b16 %v223, %v222
    %v233 = vpack.c.b16 %v225, %v224
    %242 = vmatprep.subr.bf16.mxu0 0
    %243 = vmatpush1.bf16.msra.mxu0 %v226
    %244 = vmatprep.subr.bf16.mxu0 0
    %245 = vmatpush1.bf16.msra.mxu0 %v227
    %246 = vmatprep.subr.bf16.mxu0 0
    %247 = vmatpush1.bf16.msra.mxu0 %v228
    %248 = vmatprep.subr.bf16.mxu0 0
    %249 = vmatpush1.bf16.msra.mxu0 %v229
    %250 = vmatprep.subr.bf16.mxu0 0
    %251 = vmatpush1.bf16.msra.mxu0 %v230
    %252 = vmatprep.subr.bf16.mxu0 0
    %253 = vmatpush1.bf16.msra.mxu0 %v231
    %254 = vmatprep.subr.bf16.mxu0 0
    %255 = vmatpush1.bf16.msra.mxu0 %v232
    %256 = vmatprep.subr.bf16.mxu0 0
    %257 = vmatpush1.bf16.msra.mxu0 %v233
    %258 = vmatprep.subr.bf16.mxu0 0
    %259 = vmatpush1.bf16.msra.mxu0 0
    %260 = vmatprep.subr.bf16.mxu0 0
    %261 = vmatpush1.bf16.msra.mxu0 0
    %262 = vmatprep.subr.bf16.mxu0 0
    %263 = vmatpush1.bf16.msra.mxu0 0
    %264 = vmatprep.subr.bf16.mxu0 0
    %265 = vmatpush1.bf16.msra.mxu0 0
    %266 = vmatprep.subr.bf16.mxu0 0
    %267 = vmatpush1.bf16.msra.mxu0 0
    %268 = vmatprep.subr.bf16.mxu0 0
    %269 = vmatpush1.bf16.msra.mxu0 0
    %270 = vmatprep.subr.bf16.mxu0 0
    %271 = vmatpush1.bf16.msra.mxu0 0
    %272 = vmatprep.subr.bf16.mxu0 0
    %273 = vmatpush1.bf16.msra.mxu0 0
    %274 = vmatprep.mubr.bf16.mxu0 0
    %275 = vmatmul.mubr.bf16.gmra.mrb[0].mxu0 %v169
    %v276 = vpop.f32.mrb[0].mxu0
    %v277 = vadd.f32 %v192, %v276
    %v278 = vpop.f32.mrb[0].mxu0
    %v279 = vpop.f32.mrb[0].mxu0
    %v280 = vadd.f32 %v192, %v279
    %v281 = vpop.f32.mrb[0].mxu0
    %282 = vmatprep.mubr.bf16.mxu0 0
    %283 = vmatmul.mubr.bf16.gmra.mrb[0].mxu0 %v170
    %v284 = vpop.f32.mrb[0].mxu0
    %v285 = vadd.f32 %v192, %v284
    %v286 = vpop.f32.mrb[0].mxu0
    %v287 = vpop.f32.mrb[0].mxu0
    %v288 = vadd.f32 %v192, %v287
    %v289 = vpop.f32.mrb[0].mxu0
    %290 = vdwg.mxu0
    %v291 = vmax.f32 %v277, 0.0
    %v292 = vmax.f32 %v280, 0.0
    %v293 = vmax.f32 %v285, 0.0
    %v294 = vmax.f32 %v288, 0.0
    %v295 = vpack.c.bf16 %v292, %v291
    %v296 = vpack.c.bf16 %v294, %v293
    %s297 = scalar_lea.vmem [#allocation7], 64
    %v298 = vld [vmem:[%s297] sm:$0xf]
    %v299 = vld [vmem:[%s297 + $0x4] sm:$0xf]
    %v300 = vld [vmem:[%s297 + $0x8] sm:$0xf]
    %v301 = vld [vmem:[%s297 + $0xc] sm:$0xf]
    %v302 = vld [vmem:[%s297 + $0x10] sm:$0xf]
    %v303 = vld [vmem:[%s297 + $0x14] sm:$0xf]
    %v304 = vld [vmem:[%s297 + $0x18] sm:$0xf]
    %v305 = vld [vmem:[%s297 + $0x1c] sm:$0xf]
    %v306 = vld [vmem:[%s297 + $0x20] sm:$0xf]
    %v307 = vld [vmem:[%s297 + $0x24] sm:$0xf]
    %v308 = vld [vmem:[%s297 + $0x28] sm:$0xf]
    %v309 = vld [vmem:[%s297 + $0x2c] sm:$0xf]
    %v310 = vld [vmem:[%s297 + $0x30] sm:$0xf]
    %v311 = vld [vmem:[%s297 + $0x34] sm:$0xf]
    %v312 = vld [vmem:[%s297 + $0x38] sm:$0xf]
    %v313 = vld [vmem:[%s297 + $0x3c] sm:$0xf]
    %s314 = scalar_lea.vmem %s4, 1
    %v315 = vld [vmem:[%s314] sm:$0x1]
    %v317 = vlaneseq
    %v318 = vshrl.u32 %v317, 7
    %v319 = vsub.s32 0, %v318
    %v320 = vrot.slane %v315, %v319
    %v338 = vunpack.c.l.b16 %v298
    %v339 = vunpack.c.l.b16 %v299
    %v340 = vunpack.c.l.b16 %v300
    %v341 = vunpack.c.l.b16 %v301
    %v342 = vunpack.c.l.b16 %v302
    %v343 = vunpack.c.l.b16 %v303
    %v344 = vunpack.c.l.b16 %v304
    %v345 = vunpack.c.l.b16 %v305
    %v346 = vunpack.c.l.b16 %v306
    %v347 = vunpack.c.l.b16 %v307
    %v348 = vunpack.c.l.b16 %v308
    %v349 = vunpack.c.l.b16 %v309
    %v350 = vunpack.c.l.b16 %v310
    %v351 = vunpack.c.l.b16 %v311
    %v352 = vunpack.c.l.b16 %v312
    %v353 = vunpack.c.l.b16 %v313
    %v354 = vpack.c.b16 %v339, %v338
    %v355 = vpack.c.b16 %v341, %v340
    %v356 = vpack.c.b16 %v343, %v342
    %v357 = vpack.c.b16 %v345, %v344
    %v358 = vpack.c.b16 %v347, %v346
    %v359 = vpack.c.b16 %v349, %v348
    %v360 = vpack.c.b16 %v351, %v350
    %v361 = vpack.c.b16 %v353, %v352
    %370 = vmatprep.subr.bf16.mxu0 0
    %371 = vmatpush1.bf16.msra.mxu0 %v354
    %372 = vmatprep.subr.bf16.mxu0 0
    %373 = vmatpush1.bf16.msra.mxu0 %v355
    %374 = vmatprep.subr.bf16.mxu0 0
    %375 = vmatpush1.bf16.msra.mxu0 %v356
    %376 = vmatprep.subr.bf16.mxu0 0
    %377 = vmatpush1.bf16.msra.mxu0 %v357
    %378 = vmatprep.subr.bf16.mxu0 0
    %379 = vmatpush1.bf16.msra.mxu0 %v358
    %380 = vmatprep.subr.bf16.mxu0 0
    %381 = vmatpush1.bf16.msra.mxu0 %v359
    %382 = vmatprep.subr.bf16.mxu0 0
    %383 = vmatpush1.bf16.msra.mxu0 %v360
    %384 = vmatprep.subr.bf16.mxu0 0
    %385 = vmatpush1.bf16.msra.mxu0 %v361
    %386 = vmatprep.subr.bf16.mxu0 0
    %387 = vmatpush1.bf16.msra.mxu0 0
    %388 = vmatprep.subr.bf16.mxu0 0
    %389 = vmatpush1.bf16.msra.mxu0 0
    %390 = vmatprep.subr.bf16.mxu0 0
    %391 = vmatpush1.bf16.msra.mxu0 0
    %392 = vmatprep.subr.bf16.mxu0 0
    %393 = vmatpush1.bf16.msra.mxu0 0
    %394 = vmatprep.subr.bf16.mxu0 0
    %395 = vmatpush1.bf16.msra.mxu0 0
    %396 = vmatprep.subr.bf16.mxu0 0
    %397 = vmatpush1.bf16.msra.mxu0 0
    %398 = vmatprep.subr.bf16.mxu0 0
    %399 = vmatpush1.bf16.msra.mxu0 0
    %400 = vmatprep.subr.bf16.mxu0 0
    %401 = vmatpush1.bf16.msra.mxu0 0
    %402 = vmatprep.mubr.bf16.mxu0 0
    %403 = vmatmul.mubr.bf16.gmra.mrb[0].mxu0 %v295
    %v404 = vpop.f32.mrb[0].mxu0
    %v405 = vadd.f32 %v320, %v404
    %v406 = vpop.f32.mrb[0].mxu0
    %v407 = vpop.f32.mrb[0].mxu0
    %v408 = vadd.f32 %v320, %v407
    %v409 = vpop.f32.mrb[0].mxu0
    %410 = vmatprep.mubr.bf16.mxu0 0
    %411 = vmatmul.mubr.bf16.gmra.mrb[0].mxu0 %v296
    %v412 = vpop.f32.mrb[0].mxu0
    %v413 = vadd.f32 %v320, %v412
    %v414 = vpop.f32.mrb[0].mxu0
    %v415 = vpop.f32.mrb[0].mxu0
    %v416 = vadd.f32 %v320, %v415
    %v417 = vpop.f32.mrb[0].mxu0
    %418 = vdwg.mxu0
    %v419 = vpack.c.bf16 %v408, %v405
    %v420 = vpack.c.bf16 %v416, %v413
    %421 = vmatprep.subr.bf16.mxu0 0
    %422 = vmatpush1.bf16.msra.mxu0 %v419
    %423 = vmatprep.subr.bf16.mxu0 0
    %424 = vmatpush1.bf16.msra.mxu0 %v420
    %425 = vmatprep.subr.bf16.mxu0 0
    %426 = vmatpush1.bf16.msra.mxu0 0
    %427 = vmatprep.subr.bf16.mxu0 0
    %428 = vmatpush1.bf16.msra.mxu0 0
    %429 = vmatprep.subr.bf16.mxu0 0
    %430 = vmatpush1.bf16.msra.mxu0 0
    %431 = vmatprep.subr.bf16.mxu0 0
    %432 = vmatpush1.bf16.msra.mxu0 0
    %433 = vmatprep.subr.bf16.mxu0 0
    %434 = vmatpush1.bf16.msra.mxu0 0
    %435 = vmatprep.subr.bf16.mxu0 0
    %436 = vmatpush1.bf16.msra.mxu0 0
    %437 = vmatprep.subr.bf16.mxu0 0
    %438 = vmatpush1.bf16.msra.mxu0 0
    %439 = vmatprep.subr.bf16.mxu0 0
    %440 = vmatpush1.bf16.msra.mxu0 0
    %441 = vmatprep.subr.bf16.mxu0 0
    %442 = vmatpush1.bf16.msra.mxu0 0
    %443 = vmatprep.subr.bf16.mxu0 0
    %444 = vmatpush1.bf16.msra.mxu0 0
    %445 = vmatprep.subr.bf16.mxu0 0
    %446 = vmatpush1.bf16.msra.mxu0 0
    %447 = vmatprep.subr.bf16.mxu0 0
    %448 = vmatpush1.bf16.msra.mxu0 0
    %449 = vmatprep.subr.bf16.mxu0 0
    %450 = vmatpush1.bf16.msra.mxu0 0
    %451 = vmatprep.subr.bf16.mxu0 0
    %452 = vmatpush1.bf16.msra.mxu0 0
    %453 = vmatprep.mubr.bf16.mxu0 0
    %454 = vmatmul.mubr.bf16.gmra.mrb[0].mxu0 %v115
    %v455 = vpop.f32.mrb[0].mxu0
    %v456 = vadd.f32 0.0, %v455
    %v457 = vpop.f32.mrb[0].mxu0
    %v458 = vpop.f32.mrb[0].mxu0
    %v459 = vadd.f32 0.0, %v458
    %v460 = vpop.f32.mrb[0].mxu0
    %461 = vmatprep.mubr.bf16.mxu0 0
    %462 = vmatmul.mubr.bf16.gmra.mrb[0].mxu0 %v118
    %v463 = vpop.f32.mrb[0].mxu0
    %v464 = vadd.f32 0.0, %v463
    %v465 = vpop.f32.mrb[0].mxu0
    %v466 = vpop.f32.mrb[0].mxu0
    %v467 = vadd.f32 0.0, %v466
    %v468 = vpop.f32.mrb[0].mxu0
    %469 = vdwg.mxu0
    %v470 = vpack.c.bf16 %v459, %v456
    %v471 = vpack.c.bf16 %v467, %v464
    %s472 = scalar_lea.vmem [#allocation7], 128
    %v473 = vld [vmem:[%s472] sm:$0xf]
    %v474 = vld [vmem:[%s472 + $0x4] sm:$0xf]
    %v475 = vld [vmem:[%s472 + $0x8] sm:$0xf]
    %v476 = vld [vmem:[%s472 + $0xc] sm:$0xf]
    %v477 = vld [vmem:[%s472 + $0x10] sm:$0xf]
    %v478 = vld [vmem:[%s472 + $0x14] sm:$0xf]
    %v479 = vld [vmem:[%s472 + $0x18] sm:$0xf]
    %v480 = vld [vmem:[%s472 + $0x1c] sm:$0xf]
    %v481 = vld [vmem:[%s472 + $0x20] sm:$0xf]
    %v482 = vld [vmem:[%s472 + $0x24] sm:$0xf]
    %v483 = vld [vmem:[%s472 + $0x28] sm:$0xf]
    %v484 = vld [vmem:[%s472 + $0x2c] sm:$0xf]
    %v485 = vld [vmem:[%s472 + $0x30] sm:$0xf]
    %v486 = vld [vmem:[%s472 + $0x34] sm:$0xf]
    %v487 = vld [vmem:[%s472 + $0x38] sm:$0xf]
    %v488 = vld [vmem:[%s472 + $0x3c] sm:$0xf]
    %s489 = scalar_lea.vmem %s4, 2
    %v490 = vld [vmem:[%s489] sm:$0x1]
    %v492 = vlaneseq
    %v493 = vshrl.u32 %v492, 7
    %v494 = vsub.s32 0, %v493
    %v495 = vrot.slane %v490, %v494
    %v513 = vunpack.c.l.b16 %v473
    %v514 = vunpack.c.l.b16 %v474
    %v515 = vunpack.c.l.b16 %v475
    %v516 = vunpack.c.l.b16 %v476
    %v517 = vunpack.c.l.b16 %v477
    %v518 = vunpack.c.l.b16 %v478
    %v519 = vunpack.c.l.b16 %v479
    %v520 = vunpack.c.l.b16 %v480
    %v521 = vunpack.c.l.b16 %v481
    %v522 = vunpack.c.l.b16 %v482
    %v523 = vunpack.c.l.b16 %v483
    %v524 = vunpack.c.l.b16 %v484
    %v525 = vunpack.c.l.b16 %v485
    %v526 = vunpack.c.l.b16 %v486
    %v527 = vunpack.c.l.b16 %v487
    %v528 = vunpack.c.l.b16 %v488
    %v529 = vpack.c.b16 %v514, %v513
    %v530 = vpack.c.b16 %v516, %v515
    %v531 = vpack.c.b16 %v518, %v517
    %v532 = vpack.c.b16 %v520, %v519
    %v533 = vpack.c.b16 %v522, %v521
    %v534 = vpack.c.b16 %v524, %v523
    %v535 = vpack.c.b16 %v526, %v525
    %v536 = vpack.c.b16 %v528, %v527
    %545 = vmatprep.subr.bf16.mxu0 0
    %546 = vmatpush1.bf16.msra.mxu0 %v529
    %547 = vmatprep.subr.bf16.mxu0 0
    %548 = vmatpush1.bf16.msra.mxu0 %v530
    %549 = vmatprep.subr.bf16.mxu0 0
    %550 = vmatpush1.bf16.msra.mxu0 %v531
    %551 = vmatprep.subr.bf16.mxu0 0
    %552 = vmatpush1.bf16.msra.mxu0 %v532
    %553 = vmatprep.subr.bf16.mxu0 0
    %554 = vmatpush1.bf16.msra.mxu0 %v533
    %555 = vmatprep.subr.bf16.mxu0 0
    %556 = vmatpush1.bf16.msra.mxu0 %v534
    %557 = vmatprep.subr.bf16.mxu0 0
    %558 = vmatpush1.bf16.msra.mxu0 %v535
    %559 = vmatprep.subr.bf16.mxu0 0
    %560 = vmatpush1.bf16.msra.mxu0 %v536
    %561 = vmatprep.subr.bf16.mxu0 0
    %562 = vmatpush1.bf16.msra.mxu0 0
    %563 = vmatprep.subr.bf16.mxu0 0
    %564 = vmatpush1.bf16.msra.mxu0 0
    %565 = vmatprep.subr.bf16.mxu0 0
    %566 = vmatpush1.bf16.msra.mxu0 0
    %567 = vmatprep.subr.bf16.mxu0 0
    %568 = vmatpush1.bf16.msra.mxu0 0
    %569 = vmatprep.subr.bf16.mxu0 0
    %570 = vmatpush1.bf16.msra.mxu0 0
    %571 = vmatprep.subr.bf16.mxu0 0
    %572 = vmatpush1.bf16.msra.mxu0 0
    %573 = vmatprep.subr.bf16.mxu0 0
    %574 = vmatpush1.bf16.msra.mxu0 0
    %575 = vmatprep.subr.bf16.mxu0 0
    %576 = vmatpush1.bf16.msra.mxu0 0
    %577 = vmatprep.mubr.bf16.mxu0 0
    %578 = vmatmul.mubr.bf16.gmra.mrb[0].mxu0 %v470
    %v579 = vpop.f32.mrb[0].mxu0
    %v580 = vadd.f32 %v495, %v579
    %v581 = vpop.f32.mrb[0].mxu0
    %v582 = vpop.f32.mrb[0].mxu0
    %v583 = vadd.f32 %v495, %v582
    %v584 = vpop.f32.mrb[0].mxu0
    %585 = vmatprep.mubr.bf16.mxu0 0
    %586 = vmatmul.mubr.bf16.gmra.mrb[0].mxu0 %v471
    %v587 = vpop.f32.mrb[0].mxu0
    %v588 = vadd.f32 %v495, %v587
    %v589 = vpop.f32.mrb[0].mxu0
    %v590 = vpop.f32.mrb[0].mxu0
    %v591 = vadd.f32 %v495, %v590
    %v592 = vpop.f32.mrb[0].mxu0
    %593 = vdwg.mxu0
    %v594 = vmax.f32 %v580, 0.0
    %v595 = vmax.f32 %v583, 0.0
    %v596 = vmax.f32 %v588, 0.0
    %v597 = vmax.f32 %v591, 0.0
    %v598 = vpack.c.bf16 %v595, %v594
    %v599 = vpack.c.bf16 %v597, %v596
    %s600 = scalar_lea.vmem [#allocation7], 192
    %v601 = vld [vmem:[%s600] sm:$0xf]
    %v602 = vld [vmem:[%s600 + $0x4] sm:$0xf]
    %v603 = vld [vmem:[%s600 + $0x8] sm:$0xf]
    %v604 = vld [vmem:[%s600 + $0xc] sm:$0xf]
    %v605 = vld [vmem:[%s600 + $0x10] sm:$0xf]
    %v606 = vld [vmem:[%s600 + $0x14] sm:$0xf]
    %v607 = vld [vmem:[%s600 + $0x18] sm:$0xf]
    %v608 = vld [vmem:[%s600 + $0x1c] sm:$0xf]
    %v609 = vld [vmem:[%s600 + $0x20] sm:$0xf]
    %v610 = vld [vmem:[%s600 + $0x24] sm:$0xf]
    %v611 = vld [vmem:[%s600 + $0x28] sm:$0xf]
    %v612 = vld [vmem:[%s600 + $0x2c] sm:$0xf]
    %v613 = vld [vmem:[%s600 + $0x30] sm:$0xf]
    %v614 = vld [vmem:[%s600 + $0x34] sm:$0xf]
    %v615 = vld [vmem:[%s600 + $0x38] sm:$0xf]
    %v616 = vld [vmem:[%s600 + $0x3c] sm:$0xf]
    %s617 = scalar_lea.vmem %s4, 3
    %v618 = vld [vmem:[%s617] sm:$0x1]
    %v620 = vlaneseq
    %v621 = vshrl.u32 %v620, 7
    %v622 = vsub.s32 0, %v621
    %v623 = vrot.slane %v618, %v622
    %v641 = vunpack.c.l.b16 %v601
    %v642 = vunpack.c.l.b16 %v602
    %v643 = vunpack.c.l.b16 %v603
    %v644 = vunpack.c.l.b16 %v604
    %v645 = vunpack.c.l.b16 %v605
    %v646 = vunpack.c.l.b16 %v606
    %v647 = vunpack.c.l.b16 %v607
    %v648 = vunpack.c.l.b16 %v608
    %v649 = vunpack.c.l.b16 %v609
    %v650 = vunpack.c.l.b16 %v610
    %v651 = vunpack.c.l.b16 %v611
    %v652 = vunpack.c.l.b16 %v612
    %v653 = vunpack.c.l.b16 %v613
    %v654 = vunpack.c.l.b16 %v614
    %v655 = vunpack.c.l.b16 %v615
    %v656 = vunpack.c.l.b16 %v616
    %v657 = vpack.c.b16 %v642, %v641
    %v658 = vpack.c.b16 %v644, %v643
    %v659 = vpack.c.b16 %v646, %v645
    %v660 = vpack.c.b16 %v648, %v647
    %v661 = vpack.c.b16 %v650, %v649
    %v662 = vpack.c.b16 %v652, %v651
    %v663 = vpack.c.b16 %v654, %v653
    %v664 = vpack.c.b16 %v656, %v655
    %673 = vmatprep.subr.bf16.mxu0 0
    %674 = vmatpush1.bf16.msra.mxu0 %v657
    %675 = vmatprep.subr.bf16.mxu0 0
    %676 = vmatpush1.bf16.msra.mxu0 %v658
    %677 = vmatprep.subr.bf16.mxu0 0
    %678 = vmatpush1.bf16.msra.mxu0 %v659
    %679 = vmatprep.subr.bf16.mxu0 0
    %680 = vmatpush1.bf16.msra.mxu0 %v660
    %681 = vmatprep.subr.bf16.mxu0 0
    %682 = vmatpush1.bf16.msra.mxu0 %v661
    %683 = vmatprep.subr.bf16.mxu0 0
    %684 = vmatpush1.bf16.msra.mxu0 %v662
    %685 = vmatprep.subr.bf16.mxu0 0
    %686 = vmatpush1.bf16.msra.mxu0 %v663
    %687 = vmatprep.subr.bf16.mxu0 0
    %688 = vmatpush1.bf16.msra.mxu0 %v664
    %689 = vmatprep.subr.bf16.mxu0 0
    %690 = vmatpush1.bf16.msra.mxu0 0
    %691 = vmatprep.subr.bf16.mxu0 0
    %692 = vmatpush1.bf16.msra.mxu0 0
    %693 = vmatprep.subr.bf16.mxu0 0
    %694 = vmatpush1.bf16.msra.mxu0 0
    %695 = vmatprep.subr.bf16.mxu0 0
    %696 = vmatpush1.bf16.msra.mxu0 0
    %697 = vmatprep.subr.bf16.mxu0 0
    %698 = vmatpush1.bf16.msra.mxu0 0
    %699 = vmatprep.subr.bf16.mxu0 0
    %700 = vmatpush1.bf16.msra.mxu0 0
    %701 = vmatprep.subr.bf16.mxu0 0
    %702 = vmatpush1.bf16.msra.mxu0 0
    %703 = vmatprep.subr.bf16.mxu0 0
    %704 = vmatpush1.bf16.msra.mxu0 0
    %705 = vmatprep.mubr.bf16.mxu0 0
    %706 = vmatmul.mubr.bf16.gmra.mrb[0].mxu0 %v598
    %v707 = vpop.f32.mrb[0].mxu0
    %v708 = vadd.f32 %v623, %v707
    %v709 = vpop.f32.mrb[0].mxu0
    %v710 = vpop.f32.mrb[0].mxu0
    %v711 = vadd.f32 %v623, %v710
    %v712 = vpop.f32.mrb[0].mxu0
    %713 = vmatprep.mubr.bf16.mxu0 0
    %714 = vmatmul.mubr.bf16.gmra.mrb[0].mxu0 %v599
    %v715 = vpop.f32.mrb[0].mxu0
    %v716 = vadd.f32 %v623, %v715
    %v717 = vpop.f32.mrb[0].mxu0
    %v718 = vpop.f32.mrb[0].mxu0
    %v719 = vadd.f32 %v623, %v718
    %v720 = vpop.f32.mrb[0].mxu0
    %721 = vdwg.mxu0
    %v722 = vpack.c.bf16 %v711, %v708
    %v723 = vpack.c.bf16 %v719, %v716
    %v724 = vld [vmem:[%s2] sm:$0xf]
    %v726 = vsel %vm113, %v724, 0
    %728 = vmatprep.subr.bf16.mxu0 0
    %729 = vmatpush1.bf16.msra.mxu0 %v722
    %730 = vmatprep.subr.bf16.mxu0 0
    %731 = vmatpush1.bf16.msra.mxu0 %v723
    %732 = vmatprep.subr.bf16.mxu0 0
    %733 = vmatpush1.bf16.msra.mxu0 0
    %734 = vmatprep.subr.bf16.mxu0 0
    %735 = vmatpush1.bf16.msra.mxu0 0
    %736 = vmatprep.subr.bf16.mxu0 0
    %737 = vmatpush1.bf16.msra.mxu0 0
    %738 = vmatprep.subr.bf16.mxu0 0
    %739 = vmatpush1.bf16.msra.mxu0 0
    %740 = vmatprep.subr.bf16.mxu0 0
    %741 = vmatpush1.bf16.msra.mxu0 0
    %742 = vmatprep.subr.bf16.mxu0 0
    %743 = vmatpush1.bf16.msra.mxu0 0
    %744 = vmatprep.subr.bf16.mxu0 0
    %745 = vmatpush1.bf16.msra.mxu0 0
    %746 = vmatprep.subr.bf16.mxu0 0
    %747 = vmatpush1.bf16.msra.mxu0 0
    %748 = vmatprep.subr.bf16.mxu0 0
    %749 = vmatpush1.bf16.msra.mxu0 0
    %750 = vmatprep.subr.bf16.mxu0 0
    %751 = vmatpush1.bf16.msra.mxu0 0
    %752 = vmatprep.subr.bf16.mxu0 0
    %753 = vmatpush1.bf16.msra.mxu0 0
    %754 = vmatprep.subr.bf16.mxu0 0
    %755 = vmatpush1.bf16.msra.mxu0 0
    %756 = vmatprep.subr.bf16.mxu0 0
    %757 = vmatpush1.bf16.msra.mxu0 0
    %758 = vmatprep.subr.bf16.mxu0 0
    %759 = vmatpush1.bf16.msra.mxu0 0
    %760 = vmatprep.mubr.bf16.mxu0 0
    %761 = vmatmul.mubr.bf16.gmra.mrb[0].mxu0 %v726
    %v762 = vpop.f32.mrb[0].mxu0
    %v763 = vadd.f32 0.0, %v762
    %v764 = vpop.f32.mrb[0].mxu0
    %v765 = vpop.f32.mrb[0].mxu0
    %v766 = vpop.f32.mrb[0].mxu0
    %767 = vdwg.mxu0
    %v768 = vpack.c.bf16 %v763, %v763
    %v769 = vld [vmem:[#allocation8] sm:$0xf]
    %v770 = vld [vmem:[#allocation8 + $0x4] sm:$0xf]
    %v771 = vld [vmem:[#allocation8 + $0x8] sm:$0xf]
    %v772 = vld [vmem:[#allocation8 + $0xc] sm:$0xf]
    %v773 = vld [vmem:[#allocation8 + $0x10] sm:$0xf]
    %v774 = vld [vmem:[#allocation8 + $0x14] sm:$0xf]
    %v775 = vld [vmem:[#allocation8 + $0x18] sm:$0xf]
    %v776 = vld [vmem:[#allocation8 + $0x1c] sm:$0xf]
    %v777 = vld [vmem:[#allocation8 + $0x20] sm:$0xf]
    %v778 = vld [vmem:[#allocation8 + $0x24] sm:$0xf]
    %v779 = vld [vmem:[#allocation8 + $0x28] sm:$0xf]
    %v780 = vld [vmem:[#allocation8 + $0x2c] sm:$0xf]
    %v781 = vld [vmem:[#allocation8 + $0x30] sm:$0xf]
    %v782 = vld [vmem:[#allocation8 + $0x34] sm:$0xf]
    %v783 = vld [vmem:[#allocation8 + $0x38] sm:$0xf]
    %v784 = vld [vmem:[#allocation8 + $0x3c] sm:$0xf]
    %v785 = vld [vmem:[%s6] sm:$0x1]
    %v787 = vlaneseq
    %v788 = vshrl.u32 %v787, 7
    %v789 = vsub.s32 0, %v788
    %v790 = vrot.slane %v785, %v789
    %v808 = vunpack.c.l.b16 %v769
    %v809 = vunpack.c.l.b16 %v770
    %v810 = vunpack.c.l.b16 %v771
    %v811 = vunpack.c.l.b16 %v772
    %v812 = vunpack.c.l.b16 %v773
    %v813 = vunpack.c.l.b16 %v774
    %v814 = vunpack.c.l.b16 %v775
    %v815 = vunpack.c.l.b16 %v776
    %v816 = vunpack.c.l.b16 %v777
    %v817 = vunpack.c.l.b16 %v778
    %v818 = vunpack.c.l.b16 %v779
    %v819 = vunpack.c.l.b16 %v780
    %v820 = vunpack.c.l.b16 %v781
    %v821 = vunpack.c.l.b16 %v782
    %v822 = vunpack.c.l.b16 %v783
    %v823 = vunpack.c.l.b16 %v784
    %v824 = vpack.c.b16 %v809, %v808
    %v825 = vpack.c.b16 %v811, %v810
    %v826 = vpack.c.b16 %v813, %v812
    %v827 = vpack.c.b16 %v815, %v814
    %v828 = vpack.c.b16 %v817, %v816
    %v829 = vpack.c.b16 %v819, %v818
    %v830 = vpack.c.b16 %v821, %v820
    %v831 = vpack.c.b16 %v823, %v822
    %840 = vmatprep.subr.bf16.mxu0 0
    %841 = vmatpush1.bf16.msra.mxu0 %v824
    %842 = vmatprep.subr.bf16.mxu0 0
    %843 = vmatpush1.bf16.msra.mxu0 %v825
    %844 = vmatprep.subr.bf16.mxu0 0
    %845 = vmatpush1.bf16.msra.mxu0 %v826
    %846 = vmatprep.subr.bf16.mxu0 0
    %847 = vmatpush1.bf16.msra.mxu0 %v827
    %848 = vmatprep.subr.bf16.mxu0 0
    %849 = vmatpush1.bf16.msra.mxu0 %v828
    %850 = vmatprep.subr.bf16.mxu0 0
    %851 = vmatpush1.bf16.msra.mxu0 %v829
    %852 = vmatprep.subr.bf16.mxu0 0
    %853 = vmatpush1.bf16.msra.mxu0 %v830
    %854 = vmatprep.subr.bf16.mxu0 0
    %855 = vmatpush1.bf16.msra.mxu0 %v831
    %856 = vmatprep.subr.bf16.mxu0 0
    %857 = vmatpush1.bf16.msra.mxu0 0
    %858 = vmatprep.subr.bf16.mxu0 0
    %859 = vmatpush1.bf16.msra.mxu0 0
    %860 = vmatprep.subr.bf16.mxu0 0
    %861 = vmatpush1.bf16.msra.mxu0 0
    %862 = vmatprep.subr.bf16.mxu0 0
    %863 = vmatpush1.bf16.msra.mxu0 0
    %864 = vmatprep.subr.bf16.mxu0 0
    %865 = vmatpush1.bf16.msra.mxu0 0
    %866 = vmatprep.subr.bf16.mxu0 0
    %867 = vmatpush1.bf16.msra.mxu0 0
    %868 = vmatprep.subr.bf16.mxu0 0
    %869 = vmatpush1.bf16.msra.mxu0 0
    %870 = vmatprep.subr.bf16.mxu0 0
    %871 = vmatpush1.bf16.msra.mxu0 0
    %872 = vmatprep.mubr.bf16.mxu0 0
    %873 = vmatmul.mubr.bf16.gmra.mrb[0].mxu0 %v768
    %v874 = vpop.f32.mrb[0].mxu0
    %v875 = vadd.f32 %v790, %v874
    %v876 = vpop.f32.mrb[0].mxu0
    %v877 = vpop.f32.mrb[0].mxu0
    %v878 = vpop.f32.mrb[0].mxu0
    %879 = vdwg.mxu0
    %v880 = vmax.f32 %v875, 0.0
    %v881 = vpack.c.bf16 %v880, %v880
    %s882 = scalar_lea.vmem [#allocation8], 64
    %v883 = vld [vmem:[%s882] sm:$0xf]
    %v884 = vld [vmem:[%s882 + $0x4] sm:$0xf]
    %v885 = vld [vmem:[%s882 + $0x8] sm:$0xf]
    %v886 = vld [vmem:[%s882 + $0xc] sm:$0xf]
    %v887 = vld [vmem:[%s882 + $0x10] sm:$0xf]
    %v888 = vld [vmem:[%s882 + $0x14] sm:$0xf]
    %v889 = vld [vmem:[%s882 + $0x18] sm:$0xf]
    %v890 = vld [vmem:[%s882 + $0x1c] sm:$0xf]
    %v891 = vld [vmem:[%s882 + $0x20] sm:$0xf]
    %v892 = vld [vmem:[%s882 + $0x24] sm:$0xf]
    %v893 = vld [vmem:[%s882 + $0x28] sm:$0xf]
    %v894 = vld [vmem:[%s882 + $0x2c] sm:$0xf]
    %v895 = vld [vmem:[%s882 + $0x30] sm:$0xf]
    %v896 = vld [vmem:[%s882 + $0x34] sm:$0xf]
    %v897 = vld [vmem:[%s882 + $0x38] sm:$0xf]
    %v898 = vld [vmem:[%s882 + $0x3c] sm:$0xf]
    %s899 = scalar_lea.vmem %s6, 1
    %v900 = vld [vmem:[%s899] sm:$0x1]
    %v902 = vlaneseq
    %v903 = vshrl.u32 %v902, 7
    %v904 = vsub.s32 0, %v903
    %v905 = vrot.slane %v900, %v904
    %v923 = vunpack.c.l.b16 %v883
    %v924 = vunpack.c.l.b16 %v884
    %v925 = vunpack.c.l.b16 %v885
    %v926 = vunpack.c.l.b16 %v886
    %v927 = vunpack.c.l.b16 %v887
    %v928 = vunpack.c.l.b16 %v888
    %v929 = vunpack.c.l.b16 %v889
    %v930 = vunpack.c.l.b16 %v890
    %v931 = vunpack.c.l.b16 %v891
    %v932 = vunpack.c.l.b16 %v892
    %v933 = vunpack.c.l.b16 %v893
    %v934 = vunpack.c.l.b16 %v894
    %v935 = vunpack.c.l.b16 %v895
    %v936 = vunpack.c.l.b16 %v896
    %v937 = vunpack.c.l.b16 %v897
    %v938 = vunpack.c.l.b16 %v898
    %v939 = vpack.c.b16 %v924, %v923
    %v940 = vpack.c.b16 %v926, %v925
    %v941 = vpack.c.b16 %v928, %v927
    %v942 = vpack.c.b16 %v930, %v929
    %v943 = vpack.c.b16 %v932, %v931
    %v944 = vpack.c.b16 %v934, %v933
    %v945 = vpack.c.b16 %v936, %v935
    %v946 = vpack.c.b16 %v938, %v937
    %955 = vmatprep.subr.bf16.mxu0 0
    %956 = vmatpush1.bf16.msra.mxu0 %v939
    %957 = vmatprep.subr.bf16.mxu0 0
    %958 = vmatpush1.bf16.msra.mxu0 %v940
    %959 = vmatprep.subr.bf16.mxu0 0
    %960 = vmatpush1.bf16.msra.mxu0 %v941
    %961 = vmatprep.subr.bf16.mxu0 0
    %962 = vmatpush1.bf16.msra.mxu0 %v942
    %963 = vmatprep.subr.bf16.mxu0 0
    %964 = vmatpush1.bf16.msra.mxu0 %v943
    %965 = vmatprep.subr.bf16.mxu0 0
    %966 = vmatpush1.bf16.msra.mxu0 %v944
    %967 = vmatprep.subr.bf16.mxu0 0
    %968 = vmatpush1.bf16.msra.mxu0 %v945
    %969 = vmatprep.subr.bf16.mxu0 0
    %970 = vmatpush1.bf16.msra.mxu0 %v946
    %971 = vmatprep.subr.bf16.mxu0 0
    %972 = vmatpush1.bf16.msra.mxu0 0
    %973 = vmatprep.subr.bf16.mxu0 0
    %974 = vmatpush1.bf16.msra.mxu0 0
    %975 = vmatprep.subr.bf16.mxu0 0
    %976 = vmatpush1.bf16.msra.mxu0 0
    %977 = vmatprep.subr.bf16.mxu0 0
    %978 = vmatpush1.bf16.msra.mxu0 0
    %979 = vmatprep.subr.bf16.mxu0 0
    %980 = vmatpush1.bf16.msra.mxu0 0
    %981 = vmatprep.subr.bf16.mxu0 0
    %982 = vmatpush1.bf16.msra.mxu0 0
    %983 = vmatprep.subr.bf16.mxu0 0
    %984 = vmatpush1.bf16.msra.mxu0 0
    %985 = vmatprep.subr.bf16.mxu0 0
    %986 = vmatpush1.bf16.msra.mxu0 0
    %987 = vmatprep.mubr.bf16.mxu0 0
    %988 = vmatmul.mubr.bf16.gmra.mrb[0].mxu0 %v881
    %v989 = vpop.f32.mrb[0].mxu0
    %v990 = vadd.f32 %v905, %v989
    %v991 = vpop.f32.mrb[0].mxu0
    %v992 = vpop.f32.mrb[0].mxu0
    %v993 = vpop.f32.mrb[0].mxu0
    %994 = vdwg.mxu0
    %v995 = vlaneseq
    %v996 = vand.u32 %v995, 127
    %vm997 = vcmp.lt.s32.totalorder %v996, 4
    %v998 = vsel %vm997, %v990, -1e+30
    %999 = vmax.xlane.f32.xlu0 %v998
    %v1000 = vpop.xlane.xlu0 %999
    %v1001 = vsub.f32 %v998, %v1000
    %v1002 = vmul.f32 %v1001, 1.442695
    %v1003 = vpow.pop %v1002
    %v1004 = vsel %vm997, %v1003, 0.0
    %1005 = vadd.xlane.f32.xlu0 %v1004
    %v1006 = vpop.xlane.xlu0 %1005
    %v1007 = vlog2.pop %v1006
    %v1008 = vmul.f32 %v1007, 0.6931472
    %v1009 = vsub.f32 %v1001, %v1008
    %1010 = vst [vmem:[#allocation10] sm:$0xff] %v1009
    // Predicated region
    $region46: #{tpu_custom_call.1} parent=1 // pred_check
      _
    $region47: #{tpu_custom_call.1} parent=1 // pred_check_branch
      %1012 = sbr.rel (0) target = $region49
    $region48: #{tpu_custom_call.1} parent=1 // pred_region
      %s1014 = ssub.s32 128, 128
      %1015 = vsyncadd [#allocation4], %s1014
      %s1017 = sshll.u32 [#allocation10], 4
      %s1018 = int_to_ptr.vmem [resolvable:$true] %s1017
      %1020 = dma.vmem_to_hbm [thread:$0]  %s1018, 128, %s7, [#allocation4]
    $region49: #{tpu_custom_call.1} parent=1 // pred_fallthru
      _
    // Predicated region
    $region50: #{tpu_custom_call.1} parent=1 // pred_check
      _
    $region51: #{tpu_custom_call.1} parent=1 // pred_check_branch
      %1022 = sbr.rel (0) target = $region53
    $region52: #{tpu_custom_call.1} parent=1 // pred_region
      %1023 = dma.done [#allocation4], 128
    $region53: #{tpu_custom_call.1} parent=1 // pred_fallthru
      _
    %1024 = vsyncpa [#allocation3], 1
    %1025 = vsyncpa [#allocation6], 1
    %1026 = vsyncpa [#allocation9], 1
    %1027 = vsyncpa [#allocation4], 1

</llo_original>
